<compile_context>
chip_gen: v5e
topology: v5e:2x2
jax: 0.10.0
libtpu: 0.0.40
codegen_flags: <defaults>
</compile_context>

<pallas_src>
import functools

import jax
import jax.numpy as jnp
from jax.experimental import pallas as pl
from jax.experimental.pallas import tpu as pltpu


def _round_up(x, m):
    return (x + m - 1) // m * m


def _cdiv(a, b):
    return (a + b - 1) // b


def _make_kernel(pool, C, keepdims):
    inv_c = 1.0 / float(C)
    # torch.var(dim=1) is unbiased (correction=1). For C == 1 torch returns
    # NaN; the inf factor below reproduces that (0 * inf = nan). Documented,
    # not guarded.
    inv_cm1 = 1.0 / float(C - 1) if C > 1 else float("inf")

    def kernel(x_ref, o_ref):
        xb = x_ref[...]                      # (bt, C, hw_tile), native dtype
        if pool == "max":
            # Stays entirely in the input dtype (no f32 upcast temporaries).
            r = jnp.max(xb, axis=1, keepdims=keepdims)
        elif pool == "avg":
            r = jnp.sum(xb.astype(jnp.float32), axis=1, keepdims=keepdims) * inv_c
        else:  # 'var' — single pass, f32 accumulation.
            xf = xb.astype(jnp.float32)
            s1 = jnp.sum(xf, axis=1, keepdims=keepdims)
            s2 = jnp.sum(xf * xf, axis=1, keepdims=keepdims)
            r = (s2 - s1 * s1 * inv_c) * inv_cm1
        o_ref[...] = r.astype(o_ref.dtype)

    return kernel


@functools.partial(jax.jit, static_argnames=("pool",))
def channel_axis_pool(x, pool="avg"):
    """x: (B, C, H, W) -> (B, 1, H, W), pooled over the channel axis."""
    assert pool in ("avg", "max", "var")
    B, C, H, W = x.shape
    HW = H * W
    itemsize = jnp.dtype(x.dtype).itemsize

    LANE = 128
    # Minimum sublane granularity for this dtype: 8 (f32) / 16 (bf16) / 32 (i8).
    sublane_min = max(8, 32 // itemsize)
    C_pad = _round_up(C, sublane_min)

    # Full-tile f32 temporaries created in the kernel body.
    n_f32_temps = {"max": 0, "avg": 1, "var": 2}[pool]

    # Conservative VMEM bytes per (bt=1, one lane column) of a grid step:
    #   2x double-buffered input block (C padded to sublane_min)
    # + 2x double-buffered output block (1 sublane padded to sublane_min)
    # + f32 temporaries (not double-buffered).
    per_bt_col = C_pad * (2 * itemsize + 4 * n_f32_temps) + 2 * sublane_min * itemsize

    # Total-footprint target: fits v7x's 64 MiB/TC VMEM with headroom, well
    # under v5e/v6e's 128 MiB; ~10x the previous block budget.
    VMEM_TARGET = 40 * 1024 * 1024

    # --- Spatial (lane) tiling: no pad/crop round trip, balanced tiles. ---
    HW128 = _round_up(HW, LANE)
    max_hw_tile = max(LANE, (VMEM_TARGET // per_bt_col) // LANE * LANE)
    if HW128 <= max_hw_tile:
        # One spatial tile: use the exact array extent (always a legal block
        # dim); a sub-128 remainder just means a masked edge store.
        hw_tile = HW
    else:
        n_hw0 = _cdiv(HW128, max_hw_tile)
        hw_tile = _round_up(_cdiv(HW128, n_hw0), LANE)   # balanced 128-multiples
    n_hw = _cdiv(HW, hw_tile)

    # --- Batch tiling: amortize per-step overhead, but keep >= 2 grid
    # programs when possible so v7x's two TensorCores both get work. ---
    divisors = [d for d in range(1, B + 1) if B % d == 0]
    fits = [d for d in divisors if d * per_bt_col * hw_tile <= VMEM_TARGET] or [1]
    multi = [d for d in fits if (B // d) * n_hw >= 2]
    bt = max(multi) if multi else max(fits)
    grid_b = B // bt

    # Sublane-dense 2D output (B, HW) when the block shape is legal
    # (second-to-last dim multiple of 8 or equal to the full dim).
    use_2d_out = (bt % 8 == 0) or (bt == B)

    # Exact-ish VMEM accounting (includes sublane padding + f32 temps).
    in_blk = bt * C_pad * hw_tile * itemsize
    if use_2d_out:
        out_blk = _round_up(bt, sublane_min) * hw_tile * itemsize
    else:
        out_blk = bt * sublane_min * hw_tile * itemsize
    temp_bytes = n_f32_temps * bt * C_pad * hw_tile * 4
    vmem_limit = 2 * in_blk + 2 * out_blk + temp_bytes + (8 << 20)

    flops_per_elem = 3 if pool == "var" else 1
    cost = pl.CostEstimate(
        flops=flops_per_elem * B * C * HW,
        transcendentals=0,
        bytes_accessed=(B * C * HW + B * HW) * itemsize,
    )

    x3 = x.reshape(B, C, HW)   # layout-only view; HW stays unpadded

    if use_2d_out:
        out_shape = jax.ShapeDtypeStruct((B, HW), x.dtype)
        out_spec = pl.BlockSpec((bt, hw_tile), lambda b, h: (b, h))
    else:
        out_shape = jax.ShapeDtypeStruct((B, 1, HW), x.dtype)
        out_spec = pl.BlockSpec((bt, 1, hw_tile), lambda b, h: (b, 0, h))

    out = pl.pallas_call(
        _make_kernel(pool, C, keepdims=not use_2d_out),
        out_shape=out_shape,
        grid_spec=pltpu.PrefetchScalarGridSpec(
            num_scalar_prefetch=0,
            grid=(grid_b, n_hw),
            in_specs=[pl.BlockSpec((bt, C, hw_tile), lambda b, h: (b, 0, h))],
            out_specs=out_spec,
        ),
        compiler_params=pltpu.CompilerParams(
            dimension_semantics=("parallel", "parallel"),
            vmem_limit_bytes=int(vmem_limit),
        ),
        cost_estimate=cost,
    )(x3)

    return out.reshape(B, 1, H, W)


def channel_axis_pool_reference(x, pool="avg"):
    if pool == "avg":
        return jnp.mean(x, axis=1, keepdims=True)
    elif pool == "max":
        return jnp.max(x, axis=1, keepdims=True)
    else:
        return jnp.var(x, axis=1, keepdims=True, ddof=1)


if __name__ == "__main__":
    key = jax.random.PRNGKey(0)

    # Primary shape consistent with the module.
    B, C, H, W = 2, 4, 16, 16
    x = jax.random.normal(key, (B, C, H, W), dtype=jnp.float32)

    # Secondary odd shape to exercise non-128-multiple spatial / odd C path.
    x_odd = jax.random.normal(jax.random.fold_in(key, 1), (3, 5, 9, 7),
                              dtype=jnp.float32)

    for pool in ("avg", "max", "var"):
        for xin in (x, x_odd):
            out = jax.block_until_ready(channel_axis_pool(xin, pool=pool))
            ref = channel_axis_pool_reference(xin, pool=pool)
            assert out.shape == (xin.shape[0], 1, xin.shape[2], xin.shape[3])
            assert jnp.allclose(out, ref, atol=2e-5, rtol=1e-4), (
                f"mismatch for pool={pool}, shape={xin.shape}")

    print("KERNEL_OK")
</pallas_src>

<mosaic_0001>
module attributes {stable_mosaic.version = 11 : i64} {
  func.func @kernel(%arg0: i32, %arg1: i32, %arg2: memref<1x4x256xf32, #tpu.memory_space<vmem>>, %arg3: memref<1x1x256xf32, #tpu.memory_space<vmem>>) attributes {dimension_semantics = [#tpu.dimension_semantics<parallel>, #tpu.dimension_semantics<parallel>], iteration_bounds = array<i64: 2, 1>, scalar_prefetch = 0 : i64, scratch_operands = 0 : i64, tpu.core_type = #tpu.core_type<tc>, window_params = [{transform_indices = @transform_0, window_bounds = array<i64: 1, 4, 256>}, {transform_indices = @transform_1, window_bounds = array<i64: 1, 1, 256>}]} {
    %c0 = arith.constant 0 : index
    %c0_0 = arith.constant 0 : index
    %c0_1 = arith.constant 0 : index
    %0 = vector.load %arg2[%c0, %c0_0, %c0_1] : memref<1x4x256xf32, #tpu.memory_space<vmem>>, vector<1x4x256xf32>
    %cst = arith.constant dense<0.000000e+00> : vector<1x256xf32>
    %1 = vector.multi_reduction <add>, %0, %cst [1] : vector<1x4x256xf32> to vector<1x256xf32>
    %2 = vector.shape_cast %1 : vector<1x256xf32> to vector<1x1x256xf32>
    %cst_2 = arith.constant 2.500000e-01 : f32
    %3 = vector.broadcast %cst_2 : f32 to vector<1x1x256xf32>
    %4 = arith.mulf %2, %3 : vector<1x1x256xf32>
    %c0_3 = arith.constant 0 : index
    %c0_4 = arith.constant 0 : index
    %c0_5 = arith.constant 0 : index
    %5 = vector.load %arg3[%c0_3, %c0_4, %c0_5] : memref<1x1x256xf32, #tpu.memory_space<vmem>>, vector<1x1x256xf32>
    tpu.vector_store %arg3[%c0_3, %c0_4, %c0_5], %4 {strides = array<i32>} : memref<1x1x256xf32, #tpu.memory_space<vmem>>, vector<1x1x256xf32>,
    return
  }
  func.func @transform_0(%arg0: i32, %arg1: i32) -> (i32, i32, i32) {
    %c0_i32 = arith.constant 0 : i32
    %c0_i32_0 = arith.constant 0 : i32
    return %arg0, %c0_i32, %arg1 : i32, i32, i32
  }
  func.func @transform_1(%arg0: i32, %arg1: i32) -> (i32, i32, i32) {
    %c0_i32 = arith.constant 0 : i32
    %c0_i32_0 = arith.constant 0 : i32
    return %arg0, %c0_i32, %arg1 : i32, i32, i32
  }
}

</mosaic_0001>

<llo_original>
// kernel: channel_axis_pool.1
$region0: #{channel_axis_pool.1}
  #allocation0 [shape = 'u32[]', space=smem, size = 0x4, offset = 0x4, fixed_abs, tag = 'smem constant byte address 0x4 - core index']
  #allocation1 [shape = 'u32[72,128]{1,0:T(1,128)}', space=vmem, size = 0x9000, scoped, tag = 'internal scratch']
  %s0 = inlined_call_operand.vmem [shape: f32[2,4,256], index: 0, kind: input, shape index: {}]
  %s1 = inlined_call_operand.vmem [shape: f32[2,1,256], index: 1, kind: output, shape index: {}]
  %s2 = sld [smem:[#allocation0]]
  $region37: #{channel_axis_pool.1} parent=0
    _
  %s4 = ssub.s32 1, %s2
  %s5 = scalar_select 0, %s4, %s2
  loop: start=0, step=1, limit=4
  $region2: #{channel_axis_pool.1} parent=0 // loop_pre_header
    _
  $region3: #{channel_axis_pool.1} parent=0 // loop_header
    %s7 = sphi 0, %s11
    %p8 = scmp.ge.s32.totalorder %s7, 4
    %s14 = sphi 0, %s26
    %s15 = sphi 0, %s22
    %s16 = sphi 0, %s14
    %s17 = sphi 0, %s15
    %s18 = sphi 0, %s16
    %s19 = sphi 0, %s17
    %s31 = sphi 0, %s33
    %s34 = sphi 0, %s31
    %s35 = sphi 0, %s34
    %s51 = sphi 0, %s35
    %s59 = sphi 0, %s61
    %s62 = sphi 0, %s59
    %s63 = sphi 0, %s62
    %s79 = sphi 0, %s63
  $region4: #{channel_axis_pool.1} parent=0 // loop_header_branch
    %10 = sbr.rel (%p8) target = $region8
  $region5: #{channel_axis_pool.1} parent=0 // loop_body
    %s12 = ssub.s32 %s7, 1
    %s13 = ssub.s32 %s7, 2
    %s20 = sadd.s32 1, %s15
    %p21 = scmp.ge.s32.totalorder %s20, 1
    %s22 = scalar_select %p21, 0, %s20
    %s23 = sadd.s32 1, %s14
    %s24 = scalar_select %p21, %s23, %s14
    %p25 = scmp.ge.s32.totalorder %s24, 2
    %s26 = scalar_select %p25, 0, %s24
    %s27 = ssub.s32 %s14, %s26
    %s28 = ssub.s32 %s15, %s22
    %s29 = sor.u32 %s27, %s28
    %p30 = scmp.eq.s32.totalorder %s29, 0
    %s32 = sadd.s32 %s31, 1
    %s33 = scalar_select %p30, %s31, %s32
    %p36 = pneg %p30
    %p37 = scmp.eq.s32.totalorder %s7, 1
    %p38 = por %p36, %p37
    %p39 = scmp.ne.s32.totalorder %s31, %s34
    %p40 = scmp.eq.s32.totalorder %s7, 0
    %p41 = por %p39, %p40
    %p42 = scmp.ne.s32.totalorder %s31, %s34
    %p43 = scmp.eq.s32.totalorder %s12, 1
    %p44 = por %p42, %p43
    %p45 = scmp.ne.s32.totalorder %s34, %s35
    %p46 = scmp.eq.s32.totalorder %s12, 0
    %p47 = por %p45, %p46
    %p48 = scmp.ne.s32.totalorder %s34, %s35
    %p49 = scmp.eq.s32.totalorder %s13, 1
    %p50 = por %p48, %p49
    %p52 = scmp.ne.s32.totalorder %s35, %s51
    %p53 = scmp.eq.s32.totalorder %s13, 0
    %p54 = por %p52, %p53
    %s55 = ssub.s32 %s14, %s26
    %s56 = ssub.s32 %s15, %s22
    %s57 = sor.u32 %s55, %s56
    %p58 = scmp.eq.s32.totalorder %s57, 0
    %s60 = sadd.s32 %s59, 1
    %s61 = scalar_select %p58, %s59, %s60
    %p64 = pneg %p58
    %p65 = scmp.eq.s32.totalorder %s7, 1
    %p66 = por %p64, %p65
    %p67 = scmp.ne.s32.totalorder %s59, %s62
    %p68 = scmp.eq.s32.totalorder %s7, 0
    %p69 = por %p67, %p68
    %p70 = scmp.ne.s32.totalorder %s59, %s62
    %p71 = scmp.eq.s32.totalorder %s12, 1
    %p72 = por %p70, %p71
    %p73 = scmp.ne.s32.totalorder %s62, %s63
    %p74 = scmp.eq.s32.totalorder %s12, 0
    %p75 = por %p73, %p74
    %p76 = scmp.ne.s32.totalorder %s62, %s63
    %p77 = scmp.eq.s32.totalorder %s13, 1
    %p78 = por %p76, %p77
    %p80 = scmp.ne.s32.totalorder %s63, %s79
    %p81 = scmp.eq.s32.totalorder %s13, 0
    %p82 = por %p80, %p81
    %p83 = scmp.le.s32.totalorder 1, %s7
    %p84 = scmp.lt.s32.totalorder %s7, 3
    %p85 = pnand %p83, %p84
    %p86 = pneg %p85
    // Predicated region
    $region9: #{channel_axis_pool.1} parent=5 // pred_check
      _
    $region10: #{channel_axis_pool.1} parent=5 // pred_check_branch
      %88 = sbr.rel (%p85) target = $region12
    $region11: #{channel_axis_pool.1} parent=5 // pred_region
      %s89 = ssub.s32 %s7, 1
    $region12: #{channel_axis_pool.1} parent=5 // pred_fallthru
      _
    %p90 = scmp.lt.s32.totalorder %s7, 2
    // Predicated region
    $region13: #{channel_axis_pool.1} parent=5 // pred_check
      %p91 = pneg %p90
    $region14: #{channel_axis_pool.1} parent=5 // pred_check_branch
      %93 = sbr.rel (%p91) target = $region16
    $region15: #{channel_axis_pool.1} parent=5 // pred_region
      // Predicated region
      $region17: #{channel_axis_pool.1} parent=15 // pred_check
        %p94 = pneg %p41
      $region18: #{channel_axis_pool.1} parent=15 // pred_check_branch
        %96 = sbr.rel (%p94) target = $region20
      $region19: #{channel_axis_pool.1} parent=15 // pred_region
        %s97 = smul.u32 2, %s15
        %p98 = scmp.lt.s32.totalorder %s14, 1
        %s99 = scalar_select %p98, %s14, 1
        %p100 = scmp.lt.s32.totalorder %s97, 1
        %s101 = scalar_select %p100, %s97, 1
        %s102 = smul.addr %s99, 2
        %s103 = sadd.s32 %s101, %s102
        %s104 = smul.addr %s103, 4
        %s105 = scalar_lea.vmem %s0, %s104
        %s106 = smul.u32 2, %s15
      $region20: #{channel_axis_pool.1} parent=15 // pred_fallthru
        _
    $region16: #{channel_axis_pool.1} parent=5 // pred_fallthru
      _
    %p107 = scmp.le.s32.totalorder 1, %s7
    %p108 = scmp.lt.s32.totalorder %s7, 3
    %p109 = pnand %p107, %p108
    %p110 = pneg %p109
    // Predicated region
    $region21: #{channel_axis_pool.1} parent=5 // pred_check
      _
    $region22: #{channel_axis_pool.1} parent=5 // pred_check_branch
      %112 = sbr.rel (%p109) target = $region24
    $region23: #{channel_axis_pool.1} parent=5 // pred_region
      %s113 = ssub.s32 %s7, 1
      %s114 = smul.u32 2, %s17
      %p115 = scmp.lt.s32.totalorder %s16, 1
      %s116 = scalar_select %p115, %s16, 1
      %p117 = scmp.lt.s32.totalorder %s114, 1
      %s118 = scalar_select %p117, %s114, 1
      %s119 = smul.addr %s116, 2
      %s120 = sadd.s32 %s118, %s119
      %s121 = smul.addr %s120, 4
      %s122 = scalar_lea.vmem %s0, %s121
      %p123 = pneg %p47
      %p124 = pneg %p44
      %p125 = pneg %p75
      %p126 = pneg %p72
      %s127 = smul.u32 2, %s17
      %p128 = scmp.lt.s32.totalorder %s16, 1
      %s129 = scalar_select %p128, %s16, 1
      %p130 = scmp.lt.s32.totalorder %s127, 1
      %s131 = scalar_select %p130, %s127, 1
      %s132 = smul.addr %s129, 2
      %s133 = sadd.s32 %s131, %s132
      %s134 = scalar_lea.vmem %s1, %s133
      %s135 = smul.u32 2, %s17
      %p136 = scmp.lt.s32.totalorder %s16, 1
      %s137 = scalar_select %p136, %s16, 1
      %p138 = scmp.lt.s32.totalorder %s135, 1
      %s139 = scalar_select %p138, %s135, 1
      %s140 = smul.addr %s137, 2
      %s141 = sadd.s32 %s139, %s140
      %s142 = smul.addr %s141, 4
      %s143 = scalar_lea.vmem %s0, %s142
      %s144 = smul.u32 2, %s17
      %s145 = smul.u32 2, %s17
      %p146 = scmp.lt.s32.totalorder %s16, 1
      %s147 = scalar_select %p146, %s16, 1
      %p148 = scmp.lt.s32.totalorder %s145, 1
      %s149 = scalar_select %p148, %s145, 1
      %s150 = smul.addr %s147, 2
      %s151 = sadd.s32 %s149, %s150
      %s152 = scalar_lea.vmem %s1, %s151
      %s153 = smul.u32 2, %s17
      %v154 = vld [vmem:[%s143] sm:$0xff]
      %156 = vst [vmem:[#allocation1] ss:$2 sm:$0xff] %v154
      %v157 = vld.sshfl [vmem:[#allocation1] sm:$0xff pattern:$0x75316420]
      %v158 = vld.sshfl [vmem:[#allocation1 + $0x8] sm:$0xff pattern:$0x75316420]
      %vm161 = vcmask 1043456
      %v162 = vsel %vm161, %v157, 0.0
      %v163 = vrot.slane %v162, 4
      %v164 = vadd.f32 %v162, %v163
      %v165 = vrot.slane %v164, 2
      %v166 = vadd.f32 %v164, %v165
      %v167 = vrot.slane %v166, 1
      %v168 = vadd.f32 %v166, %v167
      %v169 = vsel %vm161, %v158, 0.0
      %v170 = vrot.slane %v169, 4
      %v171 = vadd.f32 %v169, %v170
      %v172 = vrot.slane %v171, 2
      %v173 = vadd.f32 %v171, %v172
      %v174 = vrot.slane %v173, 1
      %v175 = vadd.f32 %v173, %v174
      %v176 = vmul.f32 %v168, 0.25
      %v177 = vmul.f32 %v175, 0.25
      %v180 = vrot.slane %v177, 7
      %vm181 = vcmask 1040384
      %v182 = vsel %vm181, %v176, %v180
      %v184 = vlaneseq
      %vm185 = vcmp.ge.s32.totalorder %v184, 0
      %vm186 = vcmp.lt.s32.totalorder %v184, 256
      %vm187 = vmand %vm185, %vm186
      %188 = vst.msk [vmem:[%s152] sm:$0x3] %vm187, %v182
      %s189 = smul.u32 2, %s17
      %p190 = scmp.lt.s32.totalorder %s16, 1
      %s191 = scalar_select %p190, %s16, 1
      %p192 = scmp.lt.s32.totalorder %s189, 1
      %s193 = scalar_select %p192, %s189, 1
      %s194 = smul.addr %s191, 2
      %s195 = sadd.s32 %s193, %s194
      %s196 = scalar_lea.vmem %s1, %s195
      // Predicated region
      $region25: #{channel_axis_pool.1} parent=23 // pred_check
        %p197 = pneg %p72
      $region26: #{channel_axis_pool.1} parent=23 // pred_check_branch
        %199 = sbr.rel (%p197) target = $region28
      $region27: #{channel_axis_pool.1} parent=23 // pred_region
        %s200 = smul.u32 2, %s17
      $region28: #{channel_axis_pool.1} parent=23 // pred_fallthru
        _
    $region24: #{channel_axis_pool.1} parent=5 // pred_fallthru
      _
    %p201 = scmp.le.s32.totalorder 2, %s7
    // Predicated region
    $region29: #{channel_axis_pool.1} parent=5 // pred_check
      %p202 = pneg %p201
    $region30: #{channel_axis_pool.1} parent=5 // pred_check_branch
      %204 = sbr.rel (%p202) target = $region32
    $region31: #{channel_axis_pool.1} parent=5 // pred_region
      %s205 = ssub.s32 %s7, 2
      // Predicated region
      $region33: #{channel_axis_pool.1} parent=31 // pred_check
        %p206 = pneg %p78
      $region34: #{channel_axis_pool.1} parent=31 // pred_check_branch
        %208 = sbr.rel (%p206) target = $region36
      $region35: #{channel_axis_pool.1} parent=31 // pred_region
        %s209 = smul.u32 2, %s19
        %p210 = scmp.lt.s32.totalorder %s18, 1
        %s211 = scalar_select %p210, %s18, 1
        %p212 = scmp.lt.s32.totalorder %s209, 1
        %s213 = scalar_select %p212, %s209, 1
        %s214 = smul.addr %s211, 2
        %s215 = sadd.s32 %s213, %s214
        %s216 = scalar_lea.vmem %s1, %s215
      $region36: #{channel_axis_pool.1} parent=31 // pred_fallthru
        _
    $region32: #{channel_axis_pool.1} parent=5 // pred_fallthru
      _
  $region6: #{channel_axis_pool.1} parent=0 // loop_footer
    %s11 = sadd.s32 1, %s7
  $region7: #{channel_axis_pool.1} parent=0 // loop_footer_branch
    %6 = sbr.rel target = $region3
  $region8: #{channel_axis_pool.1} parent=0 // loop_exit
    _

</llo_original>
